<compile_context>
chip_gen: v5e
topology: v5e:2x2
jax: 0.10.0
libtpu: 0.0.40
codegen_flags: <defaults>
</compile_context>

<pallas_src>
import functools

import jax
import jax.numpy as jnp
from jax.experimental import pallas as pl
from jax.experimental.pallas import tpu as pltpu


def _round_up(n: int, m: int) -> int:
    return ((n + m - 1) // m) * m


def decoder_rnn_kernel(x_ref, h_ref,
                       wl_ref, bl_ref,
                       wih_ref, whh_ref,
                       big_ref, bhg_ref,
                       wout_ref, bout_ref,
                       out_ref, hid_ref,
                       *, hp: int):
    """Fused Linear + ReLU + GRU cell + output Linear (single step, batch=1).

    All shapes are lane-padded (Hp = hp, Op = padded output size):
      x_ref    : (1, Op)       input row (zero-padded)
      h_ref    : (1, Hp)       previous hidden state (zero-padded)
      wl_ref   : (Op, Hp)      input Linear weight (transposed vs PyTorch)
      bl_ref   : (1, Hp)       input Linear bias
      wih_ref  : (Hp, 3*Hp)    input->gate weights, gates [r|z|n] on lanes
      whh_ref  : (Hp, 3*Hp)    hidden->gate weights, gates [r|z|n] on lanes
      big_ref  : (1, 3*Hp)     input->gate biases
      bhg_ref  : (1, 3*Hp)     hidden->gate biases
      wout_ref : (Hp, Op)      output Linear weight (transposed vs PyTorch)
      bout_ref : (1, Op)       output Linear bias
      out_ref  : (1, Op)       decoder output projection
      hid_ref  : (1, Hp)       new hidden state
    """
    x = x_ref[...].astype(jnp.float32)
    h = h_ref[...].astype(jnp.float32)

    # Linear + ReLU -> GRU input (ReLU prevents folding this matmul into w_ih).
    xl = jnp.dot(x, wl_ref[...], preferred_element_type=jnp.float32) + bl_ref[...]
    xl = jnp.maximum(xl, 0.0)

    # Two fused lane-dense gate matmuls + single bias add each (gate order r,z,n).
    gi = jnp.dot(xl, wih_ref[...], preferred_element_type=jnp.float32) + big_ref[...]
    gh = jnp.dot(h, whh_ref[...], preferred_element_type=jnp.float32) + bhg_ref[...]

    i_r = gi[:, 0 * hp:1 * hp]
    i_z = gi[:, 1 * hp:2 * hp]
    i_n = gi[:, 2 * hp:3 * hp]
    h_r = gh[:, 0 * hp:1 * hp]
    h_z = gh[:, 1 * hp:2 * hp]
    h_n = gh[:, 2 * hp:3 * hp]

    r = jax.nn.sigmoid(i_r + h_r)
    z = jax.nn.sigmoid(i_z + h_z)
    n = jnp.tanh(i_n + r * h_n)
    h_new = (1.0 - z) * n + z * h

    # Output projection.
    out = jnp.dot(h_new, wout_ref[...], preferred_element_type=jnp.float32) + bout_ref[...]

    out_ref[...] = out.astype(out_ref.dtype)
    hid_ref[...] = h_new.astype(hid_ref.dtype)


def prepare_padded_params(p, hidden_size, output_size, lane=128):
    """Fuse the per-gate weights and zero-pad everything to lane multiples."""
    H, O = hidden_size, output_size
    Hp = _round_up(H, lane)
    Op = _round_up(O, lane)
    f32 = jnp.float32

    wl_p = jnp.zeros((Op, Hp), f32).at[:O, :H].set(p["w_lin"])
    bl_p = jnp.zeros((1, Hp), f32).at[:, :H].set(p["b_lin"])

    wih_p = jnp.zeros((Hp, 3 * Hp), f32)
    whh_p = jnp.zeros((Hp, 3 * Hp), f32)
    big_p = jnp.zeros((1, 3 * Hp), f32)
    bhg_p = jnp.zeros((1, 3 * Hp), f32)
    for g in range(3):  # gate order: r, z, n (PyTorch GRU)
        wih_p = wih_p.at[:H, g * Hp:g * Hp + H].set(p["w_ih"][g])
        whh_p = whh_p.at[:H, g * Hp:g * Hp + H].set(p["w_hh"][g])
        big_p = big_p.at[:, g * Hp:g * Hp + H].set(p["b_ih"][g][None, :])
        bhg_p = bhg_p.at[:, g * Hp:g * Hp + H].set(p["b_hh"][g][None, :])

    wout_p = jnp.zeros((Hp, Op), f32).at[:H, :O].set(p["w_out"])
    bout_p = jnp.zeros((1, Op), f32).at[:, :O].set(p["b_out"])

    return {
        "H": H, "O": O, "Hp": Hp, "Op": Op,
        "w_lin": wl_p, "b_lin": bl_p,
        "w_ih": wih_p, "w_hh": whh_p,
        "b_ih": big_p, "b_hh": bhg_p,
        "w_out": wout_p, "b_out": bout_p,
    }


def decoder_rnn_forward(x, hidden, pp):
    """x: (1, output_size); hidden: (1, 1, hidden_size).

    Returns (output, hidden) with shapes (1, output_size) and
    (1, 1, hidden_size), matching PyTorch's DecoderRNN.forward.
    """
    H, O, Hp, Op = pp["H"], pp["O"], pp["Hp"], pp["Op"]

    x_p = jnp.zeros((1, Op), jnp.float32).at[:, :O].set(x.astype(jnp.float32))
    h_p = jnp.zeros((1, Hp), jnp.float32).at[:, :H].set(
        hidden.reshape(1, H).astype(jnp.float32))

    vmem = pl.BlockSpec(memory_space=pltpu.MemorySpace.VMEM)
    out_p, hid_p = pl.pallas_call(
        functools.partial(decoder_rnn_kernel, hp=Hp),
        out_shape=(
            jax.ShapeDtypeStruct((1, Op), jnp.float32),
            jax.ShapeDtypeStruct((1, Hp), jnp.float32),
        ),
        # Single invocation, no grid; every operand fits trivially in VMEM and
        # is used as a full-array block (lane-padded, so all stores are dense).
        in_specs=[vmem] * 10,
        out_specs=(vmem, vmem),
    )(
        x_p, h_p,
        pp["w_lin"], pp["b_lin"],
        pp["w_ih"], pp["w_hh"],
        pp["b_ih"], pp["b_hh"],
        pp["w_out"], pp["b_out"],
    )

    out = out_p[:, :O]
    hid = hid_p[:, :H].reshape(1, 1, H)
    return out, hid


def init_params(key, hidden_size, output_size):
    """Deterministic synthetic parameters (PyTorch-style uniform init).

    Weights are stored pre-transposed ([in, out]) so every matmul is x @ W.
    """
    H, O = hidden_size, output_size
    ks = jax.random.split(key, 8)
    b_lin = 1.0 / jnp.sqrt(jnp.float32(O))   # Linear(output_size, hidden_size)
    b_gru = 1.0 / jnp.sqrt(jnp.float32(H))   # GRU(hidden_size, hidden_size)
    b_out = 1.0 / jnp.sqrt(jnp.float32(H))   # Linear(hidden_size, output_size)
    u = lambda k, shape, b: jax.random.uniform(k, shape, jnp.float32, -b, b)
    return {
        "w_lin": u(ks[0], (O, H), b_lin),
        "b_lin": u(ks[1], (1, H), b_lin),
        "w_ih":  u(ks[2], (3, H, H), b_gru),
        "w_hh":  u(ks[3], (3, H, H), b_gru),
        "b_ih":  u(ks[4], (3, H), b_gru),
        "b_hh":  u(ks[5], (3, H), b_gru),
        "w_out": u(ks[6], (H, O), b_out),
        "b_out": u(ks[7], (1, O), b_out),
    }


def reference_forward(x, hidden, p):
    """Pure-JAX reference of the PyTorch DecoderRNN.forward."""
    H = p["b_lin"].shape[1]
    h = hidden.reshape(1, H)
    xl = jnp.maximum(x @ p["w_lin"] + p["b_lin"], 0.0)
    i_r = xl @ p["w_ih"][0] + p["b_ih"][0:1]
    i_z = xl @ p["w_ih"][1] + p["b_ih"][1:2]
    i_n = xl @ p["w_ih"][2] + p["b_ih"][2:3]
    h_r = h @ p["w_hh"][0] + p["b_hh"][0:1]
    h_z = h @ p["w_hh"][1] + p["b_hh"][1:2]
    h_n = h @ p["w_hh"][2] + p["b_hh"][2:3]
    r = jax.nn.sigmoid(i_r + h_r)
    z = jax.nn.sigmoid(i_z + h_z)
    n = jnp.tanh(i_n + r * h_n)
    h_new = (1.0 - z) * n + z * h
    out = h_new @ p["w_out"] + p["b_out"]
    return out, h_new.reshape(1, 1, H)


if __name__ == "__main__":
    # hidden_size = NODE_PER_CHANNEL_LENGTH * num_channels = 5 * 9 = 45,
    # output_size = number of EEG channels = 9 (the decoder reconstructs one
    # sample across channels per step).
    NODE_PER_CHANNEL_LENGTH = 5
    num_channels = 9
    hidden_size = NODE_PER_CHANNEL_LENGTH * num_channels  # 45
    output_size = num_channels                            # 9

    key = jax.random.PRNGKey(0)
    k_param, k_x = jax.random.split(key, 2)

    params = init_params(k_param, hidden_size, output_size)
    padded = prepare_padded_params(params, hidden_size, output_size)

    x = jax.random.normal(k_x, (1, output_size), jnp.float32)
    hidden = jnp.zeros((1, 1, hidden_size), jnp.float32)  # DecoderRNN.initHidden()

    out, hid = decoder_rnn_forward(x, hidden, padded)
    jax.block_until_ready(out)
    jax.block_until_ready(hid)

    ref_out, ref_hid = reference_forward(x, hidden, params)
    assert out.shape == (1, output_size) and hid.shape == (1, 1, hidden_size)
    assert jnp.allclose(out, ref_out, atol=1e-4, rtol=1e-4)
    assert jnp.allclose(hid, ref_hid, atol=1e-4, rtol=1e-4)

    print("KERNEL_OK")
</pallas_src>

<mosaic_0001>
module attributes {stable_mosaic.version = 11 : i64} {
  func.func @decoder_rnn_kernel(%arg0: memref<1x128xf32, #tpu.memory_space<vmem>>, %arg1: memref<1x128xf32, #tpu.memory_space<vmem>>, %arg2: memref<128x128xf32, #tpu.memory_space<vmem>>, %arg3: memref<1x128xf32, #tpu.memory_space<vmem>>, %arg4: memref<128x384xf32, #tpu.memory_space<vmem>>, %arg5: memref<128x384xf32, #tpu.memory_space<vmem>>, %arg6: memref<1x384xf32, #tpu.memory_space<vmem>>, %arg7: memref<1x384xf32, #tpu.memory_space<vmem>>, %arg8: memref<128x128xf32, #tpu.memory_space<vmem>>, %arg9: memref<1x128xf32, #tpu.memory_space<vmem>>, %arg10: memref<1x128xf32, #tpu.memory_space<vmem>>, %arg11: memref<1x128xf32, #tpu.memory_space<vmem>>) attributes {dimension_semantics = [], scalar_prefetch = 0 : i64, scratch_operands = 0 : i64, tpu.core_type = #tpu.core_type<tc>} {
    %c0 = arith.constant 0 : index
    %c0_0 = arith.constant 0 : index
    %0 = vector.load %arg0[%c0, %c0_0] : memref<1x128xf32, #tpu.memory_space<vmem>>, vector<1x128xf32>
    %c0_1 = arith.constant 0 : index
    %c0_2 = arith.constant 0 : index
    %1 = vector.load %arg1[%c0_1, %c0_2] : memref<1x128xf32, #tpu.memory_space<vmem>>, vector<1x128xf32>
    %c0_3 = arith.constant 0 : index
    %c0_4 = arith.constant 0 : index
    %2 = vector.load %arg2[%c0_3, %c0_4] : memref<128x128xf32, #tpu.memory_space<vmem>>, vector<128x128xf32>
    %cst = arith.constant dense<0.000000e+00> : vector<1x128xf32>
    %3 = tpu.matmul %0, %2, %cst {dimension_numbers = #tpu.dot_dimension_numbers<[1], [0], [0], [1], [0, 0, 1, 1], [], []>} : vector<1x128xf32>, vector<128x128xf32>, vector<1x128xf32> -> vector<1x128xf32>
    %c0_5 = arith.constant 0 : index
    %c0_6 = arith.constant 0 : index
    %4 = vector.load %arg3[%c0_5, %c0_6] : memref<1x128xf32, #tpu.memory_space<vmem>>, vector<1x128xf32>
    %5 = arith.addf %3, %4 : vector<1x128xf32>
    %cst_7 = arith.constant 0.000000e+00 : f32
    %6 = vector.broadcast %cst_7 : f32 to vector<1x128xf32>
    %7 = arith.maximumf %5, %6 : vector<1x128xf32>
    %c0_8 = arith.constant 0 : index
    %c0_9 = arith.constant 0 : index
    %8 = vector.load %arg4[%c0_8, %c0_9] : memref<128x384xf32, #tpu.memory_space<vmem>>, vector<128x384xf32>
    %cst_10 = arith.constant dense<0.000000e+00> : vector<1x384xf32>
    %9 = tpu.matmul %7, %8, %cst_10 {dimension_numbers = #tpu.dot_dimension_numbers<[1], [0], [0], [1], [0, 0, 1, 1], [], []>} : vector<1x128xf32>, vector<128x384xf32>, vector<1x384xf32> -> vector<1x384xf32>
    %c0_11 = arith.constant 0 : index
    %c0_12 = arith.constant 0 : index
    %10 = vector.load %arg6[%c0_11, %c0_12] : memref<1x384xf32, #tpu.memory_space<vmem>>, vector<1x384xf32>
    %11 = arith.addf %9, %10 : vector<1x384xf32>
    %c0_13 = arith.constant 0 : index
    %c0_14 = arith.constant 0 : index
    %12 = vector.load %arg5[%c0_13, %c0_14] : memref<128x384xf32, #tpu.memory_space<vmem>>, vector<128x384xf32>
    %cst_15 = arith.constant dense<0.000000e+00> : vector<1x384xf32>
    %13 = tpu.matmul %1, %12, %cst_15 {dimension_numbers = #tpu.dot_dimension_numbers<[1], [0], [0], [1], [0, 0, 1, 1], [], []>} : vector<1x128xf32>, vector<128x384xf32>, vector<1x384xf32> -> vector<1x384xf32>
    %c0_16 = arith.constant 0 : index
    %c0_17 = arith.constant 0 : index
    %14 = vector.load %arg7[%c0_16, %c0_17] : memref<1x384xf32, #tpu.memory_space<vmem>>, vector<1x384xf32>
    %15 = arith.addf %13, %14 : vector<1x384xf32>
    %16 = vector.extract_strided_slice %11 {offsets = [0, 0], sizes = [1, 128], strides = [1, 1]} : vector<1x384xf32> to vector<1x128xf32>
    %17 = vector.extract_strided_slice %11 {offsets = [0, 128], sizes = [1, 128], strides = [1, 1]} : vector<1x384xf32> to vector<1x128xf32>
    %18 = vector.extract_strided_slice %11 {offsets = [0, 256], sizes = [1, 128], strides = [1, 1]} : vector<1x384xf32> to vector<1x128xf32>
    %19 = vector.extract_strided_slice %15 {offsets = [0, 0], sizes = [1, 128], strides = [1, 1]} : vector<1x384xf32> to vector<1x128xf32>
    %20 = vector.extract_strided_slice %15 {offsets = [0, 128], sizes = [1, 128], strides = [1, 1]} : vector<1x384xf32> to vector<1x128xf32>
    %21 = vector.extract_strided_slice %15 {offsets = [0, 256], sizes = [1, 128], strides = [1, 1]} : vector<1x384xf32> to vector<1x128xf32>
    %22 = arith.addf %16, %19 : vector<1x128xf32>
    %23 = arith.negf %22 : vector<1x128xf32>
    %24 = math.exp %23 : vector<1x128xf32>
    %cst_18 = arith.constant 1.000000e+00 : f32
    %25 = vector.broadcast %cst_18 : f32 to vector<1x128xf32>
    %26 = arith.addf %25, %24 : vector<1x128xf32>
    %27 = arith.divf %25, %26 : vector<1x128xf32>
    %28 = arith.addf %17, %20 : vector<1x128xf32>
    %29 = arith.negf %28 : vector<1x128xf32>
    %30 = math.exp %29 : vector<1x128xf32>
    %cst_19 = arith.constant 1.000000e+00 : f32
    %31 = vector.broadcast %cst_19 : f32 to vector<1x128xf32>
    %32 = arith.addf %31, %30 : vector<1x128xf32>
    %33 = arith.divf %31, %32 : vector<1x128xf32>
    %34 = arith.mulf %27, %21 : vector<1x128xf32>
    %35 = arith.addf %18, %34 : vector<1x128xf32>
    %36 = math.tanh %35 : vector<1x128xf32>
    %cst_20 = arith.constant 1.000000e+00 : f32
    %37 = vector.broadcast %cst_20 : f32 to vector<1x128xf32>
    %38 = arith.subf %37, %33 : vector<1x128xf32>
    %39 = arith.mulf %38, %36 : vector<1x128xf32>
    %40 = arith.mulf %33, %1 : vector<1x128xf32>
    %41 = arith.addf %39, %40 : vector<1x128xf32>
    %c0_21 = arith.constant 0 : index
    %c0_22 = arith.constant 0 : index
    %42 = vector.load %arg8[%c0_21, %c0_22] : memref<128x128xf32, #tpu.memory_space<vmem>>, vector<128x128xf32>
    %cst_23 = arith.constant dense<0.000000e+00> : vector<1x128xf32>
    %43 = tpu.matmul %41, %42, %cst_23 {dimension_numbers = #tpu.dot_dimension_numbers<[1], [0], [0], [1], [0, 0, 1, 1], [], []>} : vector<1x128xf32>, vector<128x128xf32>, vector<1x128xf32> -> vector<1x128xf32>
    %c0_24 = arith.constant 0 : index
    %c0_25 = arith.constant 0 : index
    %44 = vector.load %arg9[%c0_24, %c0_25] : memref<1x128xf32, #tpu.memory_space<vmem>>, vector<1x128xf32>
    %45 = arith.addf %43, %44 : vector<1x128xf32>
    %c0_26 = arith.constant 0 : index
    %c0_27 = arith.constant 0 : index
    %46 = vector.load %arg10[%c0_26, %c0_27] : memref<1x128xf32, #tpu.memory_space<vmem>>, vector<1x128xf32>
    tpu.vector_store %arg10[%c0_26, %c0_27], %45 {strides = array<i32>} : memref<1x128xf32, #tpu.memory_space<vmem>>, vector<1x128xf32>,
    %c0_28 = arith.constant 0 : index
    %c0_29 = arith.constant 0 : index
    %47 = vector.load %arg11[%c0_28, %c0_29] : memref<1x128xf32, #tpu.memory_space<vmem>>, vector<1x128xf32>
    tpu.vector_store %arg11[%c0_28, %c0_29], %41 {strides = array<i32>} : memref<1x128xf32, #tpu.memory_space<vmem>>, vector<1x128xf32>,
    return
  }
}

</mosaic_0001>

<llo_original>
// kernel: tpu_custom_call.1
$region0: #{tpu_custom_call.1}
  #allocation0 [shape = 'u32[]', space=smem, size = 0x4, offset = 0x4, fixed_abs, tag = 'smem constant byte address 0x4 - core index']
  #allocation1 [shape = 'u32[72,128]{1,0:T(1,128)}', space=vmem, size = 0x9000, scoped, tag = 'internal scratch']
  %s0 = inlined_call_operand.hbm [shape: f32[1,128], index: 0, kind: input, shape index: {}]
  %s1 = inlined_call_operand.hbm [shape: f32[1,128], index: 1, kind: input, shape index: {}]
  %s2 = inlined_call_operand.hbm [shape: f32[128,128], index: 2, kind: input, shape index: {}]
  %s3 = inlined_call_operand.hbm [shape: f32[1,128], index: 3, kind: input, shape index: {}]
  %s4 = inlined_call_operand.hbm [shape: f32[128,384], index: 4, kind: input, shape index: {}]
  %s5 = inlined_call_operand.hbm [shape: f32[128,384], index: 5, kind: input, shape index: {}]
  %s6 = inlined_call_operand.vmem [shape: f32[1,384], index: 6, kind: input, shape index: {}]
  %s7 = inlined_call_operand.vmem [shape: f32[1,384], index: 7, kind: input, shape index: {}]
  %s8 = inlined_call_operand.hbm [shape: f32[128,128], index: 8, kind: input, shape index: {}]
  %s9 = inlined_call_operand.vmem [shape: f32[1,128], index: 9, kind: input, shape index: {}]
  %s10 = inlined_call_operand.hbm [shape: f32[1,128], index: 10, kind: output, shape index: {0}]
  %s11 = inlined_call_operand.hbm [shape: f32[1,128], index: 11, kind: output, shape index: {1}]
  %12 = xla_tuple %s10, %s11
  %s13 = sld [smem:[#allocation0]]
  $region86: #{tpu_custom_call.1} parent=0
    _
  %s15 = ssub.s32 1, %s13
  %s16 = scalar_select 0, %s15, %s13
  $region1: #{tpu_custom_call.1} parent=0
    #allocation2 [shape = 'u8[512]{0}', space=vmem, size = 0x400, scoped, tag = 'input window, operand 0, single buffered']
    #allocation3 [shape = 's32[1]{0}', space=sflag, size = 0x4, scoped, tag = 'scoped memory for tpu_custom_call.1']
    #allocation4 [shape = 's32[1]{0}', space=sflag, size = 0x4, scoped, tag = 'scoped memory for tpu_custom_call.1']
    #allocation5 [shape = 'u8[512]{0}', space=vmem, size = 0x400, scoped, tag = 'input window, operand 1, single buffered']
    #allocation6 [shape = 's32[1]{0}', space=sflag, size = 0x4, scoped, tag = 'scoped memory for tpu_custom_call.1']
    #allocation7 [shape = 'u8[65536]{0}', space=vmem, size = 0x10000, scoped, tag = 'input window, operand 2, single buffered']
    #allocation8 [shape = 'u8[512]{0}', space=vmem, size = 0x400, scoped, tag = 'input window, operand 3, single buffered']
    #allocation9 [shape = 's32[1]{0}', space=sflag, size = 0x4, scoped, tag = 'scoped memory for tpu_custom_call.1']
    #allocation10 [shape = 'u8[196608]{0}', space=vmem, size = 0x30000, scoped, tag = 'input window, operand 4, single buffered']
    #allocation11 [shape = 'u8[196608]{0}', space=vmem, size = 0x30000, scoped, tag = 'input window, operand 5, single buffered']
    #allocation12 [shape = 's32[1]{0}', space=sflag, size = 0x4, scoped, tag = 'scoped memory for tpu_custom_call.1']
    #allocation13 [shape = 'u8[65536]{0}', space=vmem, size = 0x10000, scoped, tag = 'input window, operand 8, single buffered']
    #allocation14 [shape = 'u8[512]{0}', space=vmem, size = 0x400, scoped, tag = 'output window, operand 0, single buffered']
    #allocation15 [shape = 'u8[512]{0}', space=vmem, size = 0x400, scoped, tag = 'output window, operand 1, single buffered']
    #allocation16 [shape = 's32[1]{0}', space=sflag, size = 0x4, scoped, tag = 'scoped memory for tpu_custom_call.1']
    %17 = vsyncpa [#allocation3], 0
    %18 = vsyncpa [#allocation6], 0
    %19 = vsyncpa [#allocation9], 0
    %20 = vsyncpa [#allocation12], 0
    %21 = vsyncpa [#allocation4], 0
    %22 = vsyncpa [#allocation16], 0
    // Predicated region
    $region2: #{tpu_custom_call.1} parent=1 // pred_check
      _
    $region3: #{tpu_custom_call.1} parent=1 // pred_check_branch
      %24 = sbr.rel (0) target = $region5
    $region4: #{tpu_custom_call.1} parent=1 // pred_region
      %26 = vsyncadd [#allocation3], 0
      %s28 = sshll.u32 %s0, 4
      %s29 = int_to_ptr.hbm [resolvable:$true] %s28
      %s30 = sshll.u32 [#allocation2], 4
      %s31 = int_to_ptr.vmem [resolvable:$true] %s30
      %33 = dma.hbm_to_vmem [thread:$0]  %s29, 16, %s31, [#allocation3]
    $region5: #{tpu_custom_call.1} parent=1 // pred_fallthru
      _
    // Predicated region
    $region6: #{tpu_custom_call.1} parent=1 // pred_check
      _
    $region7: #{tpu_custom_call.1} parent=1 // pred_check_branch
      %35 = sbr.rel (0) target = $region9
    $region8: #{tpu_custom_call.1} parent=1 // pred_region
      %37 = vsyncadd [#allocation6], 0
      %s39 = sshll.u32 %s1, 4
      %s40 = int_to_ptr.hbm [resolvable:$true] %s39
      %s41 = sshll.u32 [#allocation5], 4
      %s42 = int_to_ptr.vmem [resolvable:$true] %s41
      %44 = dma.hbm_to_vmem [thread:$0]  %s40, 16, %s42, [#allocation6]
    $region9: #{tpu_custom_call.1} parent=1 // pred_fallthru
      _
    // Predicated region
    $region10: #{tpu_custom_call.1} parent=1 // pred_check
      _
    $region11: #{tpu_custom_call.1} parent=1 // pred_check_branch
      %46 = sbr.rel (0) target = $region13
    $region12: #{tpu_custom_call.1} parent=1 // pred_region
      %48 = vsyncadd [#allocation6], 0
      %s49 = sshll.u32 %s2, 4
      %s50 = int_to_ptr.hbm [resolvable:$true] %s49
      %s51 = sshll.u32 [#allocation7], 4
      %s52 = int_to_ptr.vmem [resolvable:$true] %s51
      %57 = dma.hbm_to_vmem [thread:$0]  %s50, 2048, %s52, [#allocation6], 128, 128, 8
    $region13: #{tpu_custom_call.1} parent=1 // pred_fallthru
      _
    // Predicated region
    $region14: #{tpu_custom_call.1} parent=1 // pred_check
      _
    $region15: #{tpu_custom_call.1} parent=1 // pred_check_branch
      %59 = sbr.rel (0) target = $region17
    $region16: #{tpu_custom_call.1} parent=1 // pred_region
      %61 = vsyncadd [#allocation9], 0
      %s63 = sshll.u32 %s3, 4
      %s64 = int_to_ptr.hbm [resolvable:$true] %s63
      %s65 = sshll.u32 [#allocation8], 4
      %s66 = int_to_ptr.vmem [resolvable:$true] %s65
      %68 = dma.hbm_to_vmem [thread:$0]  %s64, 16, %s66, [#allocation9]
    $region17: #{tpu_custom_call.1} parent=1 // pred_fallthru
      _
    // Predicated region
    $region18: #{tpu_custom_call.1} parent=1 // pred_check
      _
    $region19: #{tpu_custom_call.1} parent=1 // pred_check_branch
      %70 = sbr.rel (0) target = $region21
    $region20: #{tpu_custom_call.1} parent=1 // pred_region
      %72 = vsyncadd [#allocation9], 0
      %s73 = sshll.u32 %s4, 4
      %s74 = int_to_ptr.hbm [resolvable:$true] %s73
      %s75 = sshll.u32 [#allocation10], 4
      %s76 = int_to_ptr.vmem [resolvable:$true] %s75
      %81 = dma.hbm_to_vmem [thread:$0]  %s74, 6144, %s76, [#allocation9], 384, 384, 24
    $region21: #{tpu_custom_call.1} parent=1 // pred_fallthru
      _
    // Predicated region
    $region22: #{tpu_custom_call.1} parent=1 // pred_check
      _
    $region23: #{tpu_custom_call.1} parent=1 // pred_check_branch
      %83 = sbr.rel (0) target = $region25
    $region24: #{tpu_custom_call.1} parent=1 // pred_region
      %85 = vsyncadd [#allocation12], 0
      %s86 = sshll.u32 %s5, 4
      %s87 = int_to_ptr.hbm [resolvable:$true] %s86
      %s88 = sshll.u32 [#allocation11], 4
      %s89 = int_to_ptr.vmem [resolvable:$true] %s88
      %94 = dma.hbm_to_vmem [thread:$0]  %s87, 6144, %s89, [#allocation12], 384, 384, 24
    $region25: #{tpu_custom_call.1} parent=1 // pred_fallthru
      _
    // Predicated region
    $region26: #{tpu_custom_call.1} parent=1 // pred_check
      _
    $region27: #{tpu_custom_call.1} parent=1 // pred_check_branch
      %96 = sbr.rel (0) target = $region29
    $region28: #{tpu_custom_call.1} parent=1 // pred_region
      _
    $region29: #{tpu_custom_call.1} parent=1 // pred_fallthru
      _
    // Predicated region
    $region30: #{tpu_custom_call.1} parent=1 // pred_check
      _
    $region31: #{tpu_custom_call.1} parent=1 // pred_check_branch
      %98 = sbr.rel (0) target = $region33
    $region32: #{tpu_custom_call.1} parent=1 // pred_region
      _
    $region33: #{tpu_custom_call.1} parent=1 // pred_fallthru
      _
    // Predicated region
    $region34: #{tpu_custom_call.1} parent=1 // pred_check
      _
    $region35: #{tpu_custom_call.1} parent=1 // pred_check_branch
      %100 = sbr.rel (0) target = $region37
    $region36: #{tpu_custom_call.1} parent=1 // pred_region
      %102 = vsyncadd [#allocation12], 0
      %s103 = sshll.u32 %s8, 4
      %s104 = int_to_ptr.hbm [resolvable:$true] %s103
      %s105 = sshll.u32 [#allocation13], 4
      %s106 = int_to_ptr.vmem [resolvable:$true] %s105
      %111 = dma.hbm_to_vmem [thread:$0]  %s104, 2048, %s106, [#allocation12], 128, 128, 8
    $region37: #{tpu_custom_call.1} parent=1 // pred_fallthru
      _
    // Predicated region
    $region38: #{tpu_custom_call.1} parent=1 // pred_check
      _
    $region39: #{tpu_custom_call.1} parent=1 // pred_check_branch
      %113 = sbr.rel (0) target = $region41
    $region40: #{tpu_custom_call.1} parent=1 // pred_region
      _
    $region41: #{tpu_custom_call.1} parent=1 // pred_fallthru
      _
    // Predicated region
    $region42: #{tpu_custom_call.1} parent=1 // pred_check
      _
    $region43: #{tpu_custom_call.1} parent=1 // pred_check_branch
      %115 = sbr.rel (0) target = $region45
    $region44: #{tpu_custom_call.1} parent=1 // pred_region
      %117 = dma.done [#allocation3], 16
    $region45: #{tpu_custom_call.1} parent=1 // pred_fallthru
      _
    // Predicated region
    $region46: #{tpu_custom_call.1} parent=1 // pred_check
      _
    $region47: #{tpu_custom_call.1} parent=1 // pred_check_branch
      %119 = sbr.rel (0) target = $region49
    $region48: #{tpu_custom_call.1} parent=1 // pred_region
      %121 = dma.done [#allocation6], 16
    $region49: #{tpu_custom_call.1} parent=1 // pred_fallthru
      _
    // Predicated region
    $region50: #{tpu_custom_call.1} parent=1 // pred_check
      _
    $region51: #{tpu_custom_call.1} parent=1 // pred_check_branch
      %123 = sbr.rel (0) target = $region53
    $region52: #{tpu_custom_call.1} parent=1 // pred_region
      %125 = dma.done [#allocation6], 2048
    $region53: #{tpu_custom_call.1} parent=1 // pred_fallthru
      _
    // Predicated region
    $region54: #{tpu_custom_call.1} parent=1 // pred_check
      _
    $region55: #{tpu_custom_call.1} parent=1 // pred_check_branch
      %127 = sbr.rel (0) target = $region57
    $region56: #{tpu_custom_call.1} parent=1 // pred_region
      %129 = dma.done [#allocation9], 16
    $region57: #{tpu_custom_call.1} parent=1 // pred_fallthru
      _
    // Predicated region
    $region58: #{tpu_custom_call.1} parent=1 // pred_check
      _
    $region59: #{tpu_custom_call.1} parent=1 // pred_check_branch
      %131 = sbr.rel (0) target = $region61
    $region60: #{tpu_custom_call.1} parent=1 // pred_region
      %133 = dma.done [#allocation9], 6144
    $region61: #{tpu_custom_call.1} parent=1 // pred_fallthru
      _
    // Predicated region
    $region62: #{tpu_custom_call.1} parent=1 // pred_check
      _
    $region63: #{tpu_custom_call.1} parent=1 // pred_check_branch
      %135 = sbr.rel (0) target = $region65
    $region64: #{tpu_custom_call.1} parent=1 // pred_region
      %137 = dma.done [#allocation12], 6144
    $region65: #{tpu_custom_call.1} parent=1 // pred_fallthru
      _
    // Predicated region
    $region66: #{tpu_custom_call.1} parent=1 // pred_check
      _
    $region67: #{tpu_custom_call.1} parent=1 // pred_check_branch
      %139 = sbr.rel (0) target = $region69
    $region68: #{tpu_custom_call.1} parent=1 // pred_region
      %141 = dma.done [#allocation12], 2048
    $region69: #{tpu_custom_call.1} parent=1 // pred_fallthru
      _
    %v142 = vld [vmem:[#allocation2] sm:$0x1]
    %v143 = vld [vmem:[#allocation5] sm:$0x1]
    %v144 = vld [vmem:[#allocation7] sm:$0xff]
    %v145 = vld [vmem:[#allocation7 + $0x8] sm:$0xff]
    %v146 = vld [vmem:[#allocation7 + $0x10] sm:$0xff]
    %v147 = vld [vmem:[#allocation7 + $0x18] sm:$0xff]
    %v148 = vld [vmem:[#allocation7 + $0x20] sm:$0xff]
    %v149 = vld [vmem:[#allocation7 + $0x28] sm:$0xff]
    %v150 = vld [vmem:[#allocation7 + $0x30] sm:$0xff]
    %v151 = vld [vmem:[#allocation7 + $0x38] sm:$0xff]
    %v152 = vld [vmem:[#allocation7 + $0x40] sm:$0xff]
    %v153 = vld [vmem:[#allocation7 + $0x48] sm:$0xff]
    %v154 = vld [vmem:[#allocation7 + $0x50] sm:$0xff]
    %v155 = vld [vmem:[#allocation7 + $0x58] sm:$0xff]
    %v156 = vld [vmem:[#allocation7 + $0x60] sm:$0xff]
    %v157 = vld [vmem:[#allocation7 + $0x68] sm:$0xff]
    %v158 = vld [vmem:[#allocation7 + $0x70] sm:$0xff]
    %v159 = vld [vmem:[#allocation7 + $0x78] sm:$0xff]
    %v160 = vld [vmem:[#allocation8] sm:$0x1]
    %161 = vmatpush.msra.mxu0 %v159
    %162 = vmatpush.msra.mxu0 %v158
    %163 = vmatpush.msra.mxu0 %v157
    %164 = vmatpush.msra.mxu0 %v156
    %165 = vmatpush.msra.mxu0 %v155
    %166 = vmatpush.msra.mxu0 %v154
    %167 = vmatpush.msra.mxu0 %v153
    %168 = vmatpush.msra.mxu0 %v152
    %169 = vmatpush.msra.mxu0 %v151
    %170 = vmatpush.msra.mxu0 %v150
    %171 = vmatpush.msra.mxu0 %v149
    %172 = vmatpush.msra.mxu0 %v148
    %173 = vmatpush.msra.mxu0 %v147
    %174 = vmatpush.msra.mxu0 %v146
    %175 = vmatpush.msra.mxu0 %v145
    %176 = vmatpush.msra.mxu0 %v144
    %177 = vmatmul.f32.gmra.mxu0 %v142
    %v178 = vpop.f32.mrf.mxu0
    %v179 = vadd.f32 %v160, %v178
    %180 = vdwg.mxu0
    %v181 = vmax.f32 %v179, 0.0
    %v182 = vld [vmem:[#allocation10] sm:$0xff]
    %v183 = vld [vmem:[#allocation10 + $0x8] sm:$0xff]
    %v184 = vld [vmem:[#allocation10 + $0x10] sm:$0xff]
    %v185 = vld [vmem:[#allocation10 + $0x18] sm:$0xff]
    %v186 = vld [vmem:[#allocation10 + $0x20] sm:$0xff]
    %v187 = vld [vmem:[#allocation10 + $0x28] sm:$0xff]
    %v188 = vld [vmem:[#allocation10 + $0x30] sm:$0xff]
    %v189 = vld [vmem:[#allocation10 + $0x38] sm:$0xff]
    %v190 = vld [vmem:[#allocation10 + $0x40] sm:$0xff]
    %v191 = vld [vmem:[#allocation10 + $0x48] sm:$0xff]
    %v192 = vld [vmem:[#allocation10 + $0x50] sm:$0xff]
    %v193 = vld [vmem:[#allocation10 + $0x58] sm:$0xff]
    %v194 = vld [vmem:[#allocation10 + $0x60] sm:$0xff]
    %v195 = vld [vmem:[#allocation10 + $0x68] sm:$0xff]
    %v196 = vld [vmem:[#allocation10 + $0x70] sm:$0xff]
    %v197 = vld [vmem:[#allocation10 + $0x78] sm:$0xff]
    %v198 = vld [vmem:[#allocation10 + $0x80] sm:$0xff]
    %v199 = vld [vmem:[#allocation10 + $0x88] sm:$0xff]
    %v200 = vld [vmem:[#allocation10 + $0x90] sm:$0xff]
    %v201 = vld [vmem:[#allocation10 + $0x98] sm:$0xff]
    %v202 = vld [vmem:[#allocation10 + $0xa0] sm:$0xff]
    %v203 = vld [vmem:[#allocation10 + $0xa8] sm:$0xff]
    %v204 = vld [vmem:[#allocation10 + $0xb0] sm:$0xff]
    %v205 = vld [vmem:[#allocation10 + $0xb8] sm:$0xff]
    %v206 = vld [vmem:[#allocation10 + $0xc0] sm:$0xff]
    %v207 = vld [vmem:[#allocation10 + $0xc8] sm:$0xff]
    %v208 = vld [vmem:[#allocation10 + $0xd0] sm:$0xff]
    %v209 = vld [vmem:[#allocation10 + $0xd8] sm:$0xff]
    %v210 = vld [vmem:[#allocation10 + $0xe0] sm:$0xff]
    %v211 = vld [vmem:[#allocation10 + $0xe8] sm:$0xff]
    %v212 = vld [vmem:[#allocation10 + $0xf0] sm:$0xff]
    %v213 = vld [vmem:[#allocation10 + $0xf8] sm:$0xff]
    %v214 = vld [vmem:[#allocation10 + $0x100] sm:$0xff]
    %v215 = vld [vmem:[#allocation10 + $0x108] sm:$0xff]
    %v216 = vld [vmem:[#allocation10 + $0x110] sm:$0xff]
    %v217 = vld [vmem:[#allocation10 + $0x118] sm:$0xff]
    %v218 = vld [vmem:[#allocation10 + $0x120] sm:$0xff]
    %v219 = vld [vmem:[#allocation10 + $0x128] sm:$0xff]
    %v220 = vld [vmem:[#allocation10 + $0x130] sm:$0xff]
    %v221 = vld [vmem:[#allocation10 + $0x138] sm:$0xff]
    %v222 = vld [vmem:[#allocation10 + $0x140] sm:$0xff]
    %v223 = vld [vmem:[#allocation10 + $0x148] sm:$0xff]
    %v224 = vld [vmem:[#allocation10 + $0x150] sm:$0xff]
    %v225 = vld [vmem:[#allocation10 + $0x158] sm:$0xff]
    %v226 = vld [vmem:[#allocation10 + $0x160] sm:$0xff]
    %v227 = vld [vmem:[#allocation10 + $0x168] sm:$0xff]
    %v228 = vld [vmem:[#allocation10 + $0x170] sm:$0xff]
    %v229 = vld [vmem:[#allocation10 + $0x178] sm:$0xff]
    %v230 = vld [vmem:[%s6] sm:$0x7]
    %v232 = vperm.slane %v230, 0
    %v233 = vperm.slane %v230, 1
    %v234 = vperm.slane %v230, 2
    %238 = vmatpush.msra.mxu0 %v227
    %239 = vmatpush.msra.mxu0 %v224
    %240 = vmatpush.msra.mxu0 %v221
    %241 = vmatpush.msra.mxu0 %v218
    %242 = vmatpush.msra.mxu0 %v215
    %243 = vmatpush.msra.mxu0 %v212
    %244 = vmatpush.msra.mxu0 %v209
    %245 = vmatpush.msra.mxu0 %v206
    %246 = vmatpush.msra.mxu0 %v203
    %247 = vmatpush.msra.mxu0 %v200
    %248 = vmatpush.msra.mxu0 %v197
    %249 = vmatpush.msra.mxu0 %v194
    %250 = vmatpush.msra.mxu0 %v191
    %251 = vmatpush.msra.mxu0 %v188
    %252 = vmatpush.msra.mxu0 %v185
    %253 = vmatpush.msra.mxu0 %v182
    %254 = vmatmul.f32.gmra.mxu0 %v181
    %v255 = vpop.f32.mrf.mxu0
    %v256 = vadd.f32 %v232, %v255
    %257 = vdwg.mxu0
    %258 = vmatpush.msra.mxu0 %v228
    %259 = vmatpush.msra.mxu0 %v225
    %260 = vmatpush.msra.mxu0 %v222
    %261 = vmatpush.msra.mxu0 %v219
    %262 = vmatpush.msra.mxu0 %v216
    %263 = vmatpush.msra.mxu0 %v213
    %264 = vmatpush.msra.mxu0 %v210
    %265 = vmatpush.msra.mxu0 %v207
    %266 = vmatpush.msra.mxu0 %v204
    %267 = vmatpush.msra.mxu0 %v201
    %268 = vmatpush.msra.mxu0 %v198
    %269 = vmatpush.msra.mxu0 %v195
    %270 = vmatpush.msra.mxu0 %v192
    %271 = vmatpush.msra.mxu0 %v189
    %272 = vmatpush.msra.mxu0 %v186
    %273 = vmatpush.msra.mxu0 %v183
    %274 = vmatmul.f32.gmra.mxu0 %v181
    %v275 = vpop.f32.mrf.mxu0
    %v276 = vadd.f32 %v233, %v275
    %277 = vdwg.mxu0
    %278 = vmatpush.msra.mxu0 %v229
    %279 = vmatpush.msra.mxu0 %v226
    %280 = vmatpush.msra.mxu0 %v223
    %281 = vmatpush.msra.mxu0 %v220
    %282 = vmatpush.msra.mxu0 %v217
    %283 = vmatpush.msra.mxu0 %v214
    %284 = vmatpush.msra.mxu0 %v211
    %285 = vmatpush.msra.mxu0 %v208
    %286 = vmatpush.msra.mxu0 %v205
    %287 = vmatpush.msra.mxu0 %v202
    %288 = vmatpush.msra.mxu0 %v199
    %289 = vmatpush.msra.mxu0 %v196
    %290 = vmatpush.msra.mxu0 %v193
    %291 = vmatpush.msra.mxu0 %v190
    %292 = vmatpush.msra.mxu0 %v187
    %293 = vmatpush.msra.mxu0 %v184
    %294 = vmatmul.f32.gmra.mxu0 %v181
    %v295 = vpop.f32.mrf.mxu0
    %v296 = vadd.f32 %v234, %v295
    %297 = vdwg.mxu0
    %v298 = vld [vmem:[#allocation11] sm:$0xff]
    %v299 = vld [vmem:[#allocation11 + $0x8] sm:$0xff]
    %v300 = vld [vmem:[#allocation11 + $0x10] sm:$0xff]
    %v301 = vld [vmem:[#allocation11 + $0x18] sm:$0xff]
    %v302 = vld [vmem:[#allocation11 + $0x20] sm:$0xff]
    %v303 = vld [vmem:[#allocation11 + $0x28] sm:$0xff]
    %v304 = vld [vmem:[#allocation11 + $0x30] sm:$0xff]
    %v305 = vld [vmem:[#allocation11 + $0x38] sm:$0xff]
    %v306 = vld [vmem:[#allocation11 + $0x40] sm:$0xff]
    %v307 = vld [vmem:[#allocation11 + $0x48] sm:$0xff]
    %v308 = vld [vmem:[#allocation11 + $0x50] sm:$0xff]
    %v309 = vld [vmem:[#allocation11 + $0x58] sm:$0xff]
    %v310 = vld [vmem:[#allocation11 + $0x60] sm:$0xff]
    %v311 = vld [vmem:[#allocation11 + $0x68] sm:$0xff]
    %v312 = vld [vmem:[#allocation11 + $0x70] sm:$0xff]
    %v313 = vld [vmem:[#allocation11 + $0x78] sm:$0xff]
    %v314 = vld [vmem:[#allocation11 + $0x80] sm:$0xff]
    %v315 = vld [vmem:[#allocation11 + $0x88] sm:$0xff]
    %v316 = vld [vmem:[#allocation11 + $0x90] sm:$0xff]
    %v317 = vld [vmem:[#allocation11 + $0x98] sm:$0xff]
    %v318 = vld [vmem:[#allocation11 + $0xa0] sm:$0xff]
    %v319 = vld [vmem:[#allocation11 + $0xa8] sm:$0xff]
    %v320 = vld [vmem:[#allocation11 + $0xb0] sm:$0xff]
    %v321 = vld [vmem:[#allocation11 + $0xb8] sm:$0xff]
    %v322 = vld [vmem:[#allocation11 + $0xc0] sm:$0xff]
    %v323 = vld [vmem:[#allocation11 + $0xc8] sm:$0xff]
    %v324 = vld [vmem:[#allocation11 + $0xd0] sm:$0xff]
    %v325 = vld [vmem:[#allocation11 + $0xd8] sm:$0xff]
    %v326 = vld [vmem:[#allocation11 + $0xe0] sm:$0xff]
    %v327 = vld [vmem:[#allocation11 + $0xe8] sm:$0xff]
    %v328 = vld [vmem:[#allocation11 + $0xf0] sm:$0xff]
    %v329 = vld [vmem:[#allocation11 + $0xf8] sm:$0xff]
    %v330 = vld [vmem:[#allocation11 + $0x100] sm:$0xff]
    %v331 = vld [vmem:[#allocation11 + $0x108] sm:$0xff]
    %v332 = vld [vmem:[#allocation11 + $0x110] sm:$0xff]
    %v333 = vld [vmem:[#allocation11 + $0x118] sm:$0xff]
    %v334 = vld [vmem:[#allocation11 + $0x120] sm:$0xff]
    %v335 = vld [vmem:[#allocation11 + $0x128] sm:$0xff]
    %v336 = vld [vmem:[#allocation11 + $0x130] sm:$0xff]
    %v337 = vld [vmem:[#allocation11 + $0x138] sm:$0xff]
    %v338 = vld [vmem:[#allocation11 + $0x140] sm:$0xff]
    %v339 = vld [vmem:[#allocation11 + $0x148] sm:$0xff]
    %v340 = vld [vmem:[#allocation11 + $0x150] sm:$0xff]
    %v341 = vld [vmem:[#allocation11 + $0x158] sm:$0xff]
    %v342 = vld [vmem:[#allocation11 + $0x160] sm:$0xff]
    %v343 = vld [vmem:[#allocation11 + $0x168] sm:$0xff]
    %v344 = vld [vmem:[#allocation11 + $0x170] sm:$0xff]
    %v345 = vld [vmem:[#allocation11 + $0x178] sm:$0xff]
    %v346 = vld [vmem:[%s7] sm:$0x7]
    %v348 = vperm.slane %v346, 0
    %v349 = vperm.slane %v346, 1
    %v350 = vperm.slane %v346, 2
    %354 = vmatpush.msra.mxu0 %v343
    %355 = vmatpush.msra.mxu0 %v340
    %356 = vmatpush.msra.mxu0 %v337
    %357 = vmatpush.msra.mxu0 %v334
    %358 = vmatpush.msra.mxu0 %v331
    %359 = vmatpush.msra.mxu0 %v328
    %360 = vmatpush.msra.mxu0 %v325
    %361 = vmatpush.msra.mxu0 %v322
    %362 = vmatpush.msra.mxu0 %v319
    %363 = vmatpush.msra.mxu0 %v316
    %364 = vmatpush.msra.mxu0 %v313
    %365 = vmatpush.msra.mxu0 %v310
    %366 = vmatpush.msra.mxu0 %v307
    %367 = vmatpush.msra.mxu0 %v304
    %368 = vmatpush.msra.mxu0 %v301
    %369 = vmatpush.msra.mxu0 %v298
    %370 = vmatmul.f32.gmra.mxu0 %v143
    %v371 = vpop.f32.mrf.mxu0
    %v372 = vadd.f32 %v348, %v371
    %373 = vdwg.mxu0
    %374 = vmatpush.msra.mxu0 %v344
    %375 = vmatpush.msra.mxu0 %v341
    %376 = vmatpush.msra.mxu0 %v338
    %377 = vmatpush.msra.mxu0 %v335
    %378 = vmatpush.msra.mxu0 %v332
    %379 = vmatpush.msra.mxu0 %v329
    %380 = vmatpush.msra.mxu0 %v326
    %381 = vmatpush.msra.mxu0 %v323
    %382 = vmatpush.msra.mxu0 %v320
    %383 = vmatpush.msra.mxu0 %v317
    %384 = vmatpush.msra.mxu0 %v314
    %385 = vmatpush.msra.mxu0 %v311
    %386 = vmatpush.msra.mxu0 %v308
    %387 = vmatpush.msra.mxu0 %v305
    %388 = vmatpush.msra.mxu0 %v302
    %389 = vmatpush.msra.mxu0 %v299
    %390 = vmatmul.f32.gmra.mxu0 %v143
    %v391 = vpop.f32.mrf.mxu0
    %v392 = vadd.f32 %v349, %v391
    %393 = vdwg.mxu0
    %394 = vmatpush.msra.mxu0 %v345
    %395 = vmatpush.msra.mxu0 %v342
    %396 = vmatpush.msra.mxu0 %v339
    %397 = vmatpush.msra.mxu0 %v336
    %398 = vmatpush.msra.mxu0 %v333
    %399 = vmatpush.msra.mxu0 %v330
    %400 = vmatpush.msra.mxu0 %v327
    %401 = vmatpush.msra.mxu0 %v324
    %402 = vmatpush.msra.mxu0 %v321
    %403 = vmatpush.msra.mxu0 %v318
    %404 = vmatpush.msra.mxu0 %v315
    %405 = vmatpush.msra.mxu0 %v312
    %406 = vmatpush.msra.mxu0 %v309
    %407 = vmatpush.msra.mxu0 %v306
    %408 = vmatpush.msra.mxu0 %v303
    %409 = vmatpush.msra.mxu0 %v300
    %410 = vmatmul.f32.gmra.mxu0 %v143
    %v411 = vpop.f32.mrf.mxu0
    %v412 = vadd.f32 %v350, %v411
    %413 = vdwg.mxu0
    %v414 = vadd.f32 %v256, %v372
    %v415 = vxor.u32 %v414, 2147483648
    %v416 = vmul.f32 %v415, 1.442695
    %v417 = vpow.pop %v416
    %v418 = vadd.f32 %v417, 1.0
    %v419 = vrcp.pop %v418
    %v420 = vmul.f32 %v418, %v419
    %v421 = vsub.f32 1.0, %v420
    %v422 = vmul.f32 %v419, %v421
    %v423 = vadd.f32 %v419, %v422
    %vm424 = vweird.f32 %v418
    %vm425 = vweird.f32 %v419
    %vm426 = vmor %vm424, %vm425
    %v427 = vsel %vm426, %v419, %v423
    %v428 = vand.u32 2147483647, %v418
    %vm429 = vcmp.eq.f32.partialorder %v428, 8.507059e+37
    %v430 = vand.u32 %v418, 2147483648
    %v431 = vor.u32 1.1754944e-38, %v430
    %v432 = vsel %vm429, %v431, %v427
    %v433 = vmul.f32 1.0, %v432
    %v434 = vadd.f32 %v276, %v392
    %v435 = vxor.u32 %v434, 2147483648
    %v436 = vmul.f32 %v435, 1.442695
    %v437 = vpow.pop %v436
    %v438 = vadd.f32 %v437, 1.0
    %v439 = vrcp.pop %v438
    %v440 = vmul.f32 %v438, %v439
    %v441 = vsub.f32 1.0, %v440
    %v442 = vmul.f32 %v439, %v441
    %v443 = vadd.f32 %v439, %v442
    %vm444 = vweird.f32 %v438
    %vm445 = vweird.f32 %v439
    %vm446 = vmor %vm444, %vm445
    %v447 = vsel %vm446, %v439, %v443
    %v448 = vand.u32 2147483647, %v438
    %vm449 = vcmp.eq.f32.partialorder %v448, 8.507059e+37
    %v450 = vand.u32 %v438, 2147483648
    %v451 = vor.u32 1.1754944e-38, %v450
    %v452 = vsel %vm449, %v451, %v447
    %v453 = vmul.f32 1.0, %v452
    %v454 = vmul.f32 %v433, %v412
    %v455 = vadd.f32 %v296, %v454
    %v456 = vtanh.pop %v455
    %v457 = vsub.f32 1.0, %v453
    %v458 = vmul.f32 %v457, %v456
    %v459 = vmul.f32 %v453, %v143
    %v460 = vadd.f32 %v458, %v459
    %v461 = vld [vmem:[#allocation13] sm:$0xff]
    %v462 = vld [vmem:[#allocation13 + $0x8] sm:$0xff]
    %v463 = vld [vmem:[#allocation13 + $0x10] sm:$0xff]
    %v464 = vld [vmem:[#allocation13 + $0x18] sm:$0xff]
    %v465 = vld [vmem:[#allocation13 + $0x20] sm:$0xff]
    %v466 = vld [vmem:[#allocation13 + $0x28] sm:$0xff]
    %v467 = vld [vmem:[#allocation13 + $0x30] sm:$0xff]
    %v468 = vld [vmem:[#allocation13 + $0x38] sm:$0xff]
    %v469 = vld [vmem:[#allocation13 + $0x40] sm:$0xff]
    %v470 = vld [vmem:[#allocation13 + $0x48] sm:$0xff]
    %v471 = vld [vmem:[#allocation13 + $0x50] sm:$0xff]
    %v472 = vld [vmem:[#allocation13 + $0x58] sm:$0xff]
    %v473 = vld [vmem:[#allocation13 + $0x60] sm:$0xff]
    %v474 = vld [vmem:[#allocation13 + $0x68] sm:$0xff]
    %v475 = vld [vmem:[#allocation13 + $0x70] sm:$0xff]
    %v476 = vld [vmem:[#allocation13 + $0x78] sm:$0xff]
    %v477 = vld [vmem:[%s9] sm:$0x1]
    %478 = vmatpush.msra.mxu0 %v476
    %479 = vmatpush.msra.mxu0 %v475
    %480 = vmatpush.msra.mxu0 %v474
    %481 = vmatpush.msra.mxu0 %v473
    %482 = vmatpush.msra.mxu0 %v472
    %483 = vmatpush.msra.mxu0 %v471
    %484 = vmatpush.msra.mxu0 %v470
    %485 = vmatpush.msra.mxu0 %v469
    %486 = vmatpush.msra.mxu0 %v468
    %487 = vmatpush.msra.mxu0 %v467
    %488 = vmatpush.msra.mxu0 %v466
    %489 = vmatpush.msra.mxu0 %v465
    %490 = vmatpush.msra.mxu0 %v464
    %491 = vmatpush.msra.mxu0 %v463
    %492 = vmatpush.msra.mxu0 %v462
    %493 = vmatpush.msra.mxu0 %v461
    %494 = vmatmul.f32.gmra.mxu0 %v460
    %v495 = vpop.f32.mrf.mxu0
    %v496 = vadd.f32 %v477, %v495
    %497 = vdwg.mxu0
    %498 = vst [vmem:[#allocation14] sm:$0x1] %v496
    %499 = vst [vmem:[#allocation15] sm:$0x1] %v460
    // Predicated region
    $region70: #{tpu_custom_call.1} parent=1 // pred_check
      _
    $region71: #{tpu_custom_call.1} parent=1 // pred_check_branch
      %501 = sbr.rel (0) target = $region73
    $region72: #{tpu_custom_call.1} parent=1 // pred_region
      %503 = vsyncadd [#allocation4], 0
      %s505 = sshll.u32 [#allocation14], 4
      %s506 = int_to_ptr.vmem [resolvable:$true] %s505
      %s507 = sshll.u32 %s10, 4
      %s508 = int_to_ptr.hbm [resolvable:$true] %s507
      %510 = dma.vmem_to_hbm [thread:$0]  %s506, 16, %s508, [#allocation4]
    $region73: #{tpu_custom_call.1} parent=1 // pred_fallthru
      _
    // Predicated region
    $region74: #{tpu_custom_call.1} parent=1 // pred_check
      _
    $region75: #{tpu_custom_call.1} parent=1 // pred_check_branch
      %512 = sbr.rel (0) target = $region77
    $region76: #{tpu_custom_call.1} parent=1 // pred_region
      %514 = vsyncadd [#allocation16], 0
      %s516 = sshll.u32 [#allocation15], 4
      %s517 = int_to_ptr.vmem [resolvable:$true] %s516
      %s518 = sshll.u32 %s11, 4
      %s519 = int_to_ptr.hbm [resolvable:$true] %s518
      %521 = dma.vmem_to_hbm [thread:$0]  %s517, 16, %s519, [#allocation16]
    $region77: #{tpu_custom_call.1} parent=1 // pred_fallthru
      _
    // Predicated region
    $region78: #{tpu_custom_call.1} parent=1 // pred_check
      _
    $region79: #{tpu_custom_call.1} parent=1 // pred_check_branch
      %523 = sbr.rel (0) target = $region81
    $region80: #{tpu_custom_call.1} parent=1 // pred_region
      %525 = dma.done [#allocation4], 16
    $region81: #{tpu_custom_call.1} parent=1 // pred_fallthru
      _
    // Predicated region
    $region82: #{tpu_custom_call.1} parent=1 // pred_check
      _
    $region83: #{tpu_custom_call.1} parent=1 // pred_check_branch
      %527 = sbr.rel (0) target = $region85
    $region84: #{tpu_custom_call.1} parent=1 // pred_region
      %529 = dma.done [#allocation16], 16
    $region85: #{tpu_custom_call.1} parent=1 // pred_fallthru
      _
    %530 = vsyncpa [#allocation3], 1
    %531 = vsyncpa [#allocation6], 1
    %532 = vsyncpa [#allocation9], 1
    %533 = vsyncpa [#allocation12], 1
    %534 = vsyncpa [#allocation4], 1
    %535 = vsyncpa [#allocation16], 1

</llo_original>
